<compile_context>
chip_gen: v7x
topology: tpu7x:2x2x1
jax: 0.10.0
libtpu: 0.0.40
codegen_flags: <defaults>
</compile_context>

<pallas_src>
import math

import jax
import jax.numpy as jnp
from jax.experimental import pallas as pl
from jax.experimental.pallas import tpu as pltpu


_DESIRED_GRID_STEPS = 4  # aim for >=4 grid steps when the data is big enough


def _multiplier_kernel(x_ref, w_ref, b_ref, o_ref):
    # 2-D path: x (tile_rows, L), w/b (1, L) -> broadcast over sublanes (rows).
    # 1-D path: x (blk,),        w/b (blk,) -> same shape.
    x = x_ref[...].astype(w_ref.dtype)  # compute in the promoted dtype
    o_ref[...] = (x * w_ref[...] + b_ref[...]).astype(o_ref.dtype)


def _round_down(v, m):
    return (v // m) * m


def _round_up(v, m):
    return -(-v // m) * m


def _lane_dense_fold(R, W, *, max_lanes=65536):
    """Smallest k with k | R and (k*W) % 128 == 0, or None if none exists.

    The smallest such k maximizes the row count R//k, which keeps vregs
    sublane-dense (>= 8 rows) and leaves the most freedom for a multi-step grid.
    """
    if R <= 0 or W <= 0:
        return None
    q = 128 // math.gcd(W, 128)  # k must be a multiple of q
    if R % q != 0 or q * W > max_lanes:
        return None
    return q


def _vmem_limit(buffer_bytes):
    """Per-generation VMEM limit derived from the double-buffered tile footprint."""
    try:
        phys = int(pltpu.get_tpu_info().vmem_capacity_bytes)  # v7x: 64 MiB, v5e/v6e: 128 MiB
    except Exception:  # pragma: no cover - conservative fallback
        phys = 64 * 1024 * 1024
    limit = buffer_bytes + 16 * 1024 * 1024  # tiles + Mosaic scratch headroom
    limit = max(limit, 32 * 1024 * 1024)
    return min(limit, phys - 8 * 1024 * 1024)


def _multiplier_flat(x, w_vec, b_vec, out_dtype, orig_shape, *, target_tile_bytes):
    """Fallback when no exact lane-dense 2-D reshape exists for this row count.

    Operate on the flat view with a block length that is a multiple of
    lcm(W, 128): every block then starts at weight-phase 0, so a single tiled
    (and grid-invariant) weight/bias block is exact, and stores stay lane-dense
    (only the final partial block is masked).
    """
    W = w_vec.shape[0]
    N = x.size
    itemsize = max(jnp.dtype(x.dtype).itemsize, jnp.dtype(out_dtype).itemsize)
    lcm_wl = (W * 128) // math.gcd(W, 128)

    blk = max(lcm_wl, (target_tile_bytes // (lcm_wl * itemsize)) * lcm_wl)
    blk = min(blk, _round_up(N, lcm_wl))  # never bigger than one (padded) pass
    if N >= _DESIRED_GRID_STEPS * lcm_wl:  # keep a few grid steps for megacore/pipelining
        blk = min(blk, max(lcm_wl, _round_down(N // _DESIRED_GRID_STEPS, lcm_wl)))

    x_flat = x.reshape(N)
    w_blk = jnp.tile(w_vec, blk // W)
    b_blk = jnp.tile(b_vec, blk // W)
    grid = (pl.cdiv(N, blk),)

    out_flat = pl.pallas_call(
        _multiplier_kernel,
        out_shape=jax.ShapeDtypeStruct((N,), out_dtype),
        grid_spec=pl.GridSpec(
            grid=grid,
            in_specs=[
                pl.BlockSpec((blk,), lambda i: (i,)),   # x block
                pl.BlockSpec((blk,), lambda i: (0,)),   # weight block (invariant)
                pl.BlockSpec((blk,), lambda i: (0,)),   # bias block (invariant)
            ],
            out_specs=pl.BlockSpec((blk,), lambda i: (i,)),
        ),
        compiler_params=pltpu.CompilerParams(
            dimension_semantics=("parallel",),
            vmem_limit_bytes=_vmem_limit(4 * blk * itemsize),
        ),
    )(x_flat, w_blk, b_blk)
    return out_flat.reshape(orig_shape)


def multiplier(x, weight, bias, *, target_tile_bytes=8 * 1024 * 1024, donate_x=False):
    """y = x * weight + bias, broadcasting weight/bias over x's last axis.

    donate_x: set True ONLY if the caller actually donates x's buffer into the
    enclosing jit (donate_argnums).  Otherwise XLA inserts a defensive copy of
    x before the pallas_call, adding ~50% HBM traffic to a BW-bound kernel.
    """
    orig_shape = x.shape
    W = orig_shape[-1]
    size = weight.shape[0]
    assert bias.shape == weight.shape, "weight/bias must have the same shape"
    assert size in (1, W), "weight/bias must broadcast against x's last dim"

    # PyTorch-style type promotion: compute & output in result_type(x, w, b).
    out_dtype = jnp.result_type(x.dtype, weight.dtype, bias.dtype)
    w_vec = weight.astype(out_dtype)
    b_vec = bias.astype(out_dtype)
    if size == 1 and W != 1:
        w_vec = jnp.broadcast_to(w_vec, (W,))
        b_vec = jnp.broadcast_to(b_vec, (W,))

    N = x.size
    if N == 0:
        return jnp.zeros(orig_shape, out_dtype)
    R = N // W
    itemsize = max(jnp.dtype(x.dtype).itemsize, jnp.dtype(out_dtype).itemsize)

    # ---- Lane-dense fold (smallest k that makes L = k*W a multiple of 128). ----
    k = _lane_dense_fold(R, W)
    if k is None:
        # No exact dense 2-D reshape exists (e.g. R not a multiple of
        # 128/gcd(W,128)): use the flat lane-dense fallback.  Cap the block
        # smaller there to keep 1-D codegen size in check.
        return _multiplier_flat(
            x, w_vec, b_vec, out_dtype, orig_shape,
            target_tile_bytes=min(target_tile_bytes, 2 * 1024 * 1024))

    L = k * W
    R2 = R // k
    x2d = x.reshape(R2, L)
    w_row = jnp.tile(w_vec, k).reshape(1, L)  # period-W broadcast still lines up
    b_row = jnp.tile(b_vec, k).reshape(1, L)

    # ---- Row tiling: ~target_tile_bytes per x tile, rows a multiple of 8,
    #      and at least ~_DESIRED_GRID_STEPS grid steps when R2 allows it. ----
    row_bytes = L * itemsize
    if R2 <= 8:
        tile_rows = R2  # full-extent row block
    else:
        by_bytes = max(8, _round_down(max(1, target_tile_bytes // row_bytes), 8))
        by_steps = max(8, _round_down(R2 // _DESIRED_GRID_STEPS, 8))
        tile_rows = min(R2, by_bytes, by_steps)

    grid = (pl.cdiv(R2, tile_rows),)  # partial last block: only valid rows written back
    tile_bytes = tile_rows * row_bytes

    call_kwargs = {}
    if donate_x and x2d.dtype == out_dtype:
        # Reuse x's HBM buffer for the output (halves peak HBM footprint);
        # only valid when the caller donated x.
        call_kwargs["input_output_aliases"] = {0: 0}

    out2d = pl.pallas_call(
        _multiplier_kernel,
        out_shape=jax.ShapeDtypeStruct((R2, L), out_dtype),
        grid_spec=pl.GridSpec(
            grid=grid,
            in_specs=[
                pl.BlockSpec((tile_rows, L), lambda i: (i, 0)),  # x tile
                pl.BlockSpec((1, L), lambda i: (0, 0)),          # weight row (invariant)
                pl.BlockSpec((1, L), lambda i: (0, 0)),          # bias row (invariant)
            ],
            out_specs=pl.BlockSpec((tile_rows, L), lambda i: (i, 0)),
        ),
        compiler_params=pltpu.CompilerParams(
            dimension_semantics=("parallel",),   # megacore-splittable on v7x
            vmem_limit_bytes=_vmem_limit(4 * tile_bytes),
        ),
        **call_kwargs,
    )(x2d, w_row, b_row)

    return out2d.reshape(orig_shape)


if __name__ == "__main__":
    key = jax.random.PRNGKey(0)
    kx, kw, kb, kx2, kx3 = jax.random.split(key, 5)

    B, C, H, W = 2, 4, 16, 16
    x = jax.random.normal(kx, (B, C, H, W), dtype=jnp.float32)

    # 1) Default Multiplier(size=W) parameters: weight=ones, bias=zeros.
    weight = jnp.ones((W,), dtype=jnp.float32)
    bias = jnp.zeros((W,), dtype=jnp.float32)
    y = jax.block_until_ready(multiplier(x, weight, bias))
    y_ref = x * weight + bias
    assert y.shape == x.shape and y.dtype == y_ref.dtype
    assert jnp.allclose(y, y_ref, atol=1e-6, rtol=1e-6)

    # 2) Non-trivial parameters to actually exercise the math.
    weight2 = jax.random.normal(kw, (W,), dtype=jnp.float32)
    bias2 = jax.random.normal(kb, (W,), dtype=jnp.float32)
    y2 = jax.block_until_ready(multiplier(x, weight2, bias2))
    assert jnp.allclose(y2, x * weight2 + bias2, atol=1e-6, rtol=1e-6)

    # 3) Degenerate size=1 path (the module's default size).
    w1 = jnp.full((1,), 1.5, dtype=jnp.float32)
    b1 = jnp.full((1,), -0.25, dtype=jnp.float32)
    y3 = jax.block_until_ready(multiplier(x, w1, b1))
    assert jnp.allclose(y3, x * w1 + b1, atol=1e-6, rtol=1e-6)

    # 4) Row count not divisible by the tile: partial last block in the 2-D path.
    x4 = jax.random.normal(kx2, (8, 11, W), dtype=jnp.float32)
    y4 = jax.block_until_ready(multiplier(x4, weight2, bias2))
    assert jnp.allclose(y4, x4 * weight2 + bias2, atol=1e-6, rtol=1e-6)

    # 5) Awkward row count (8 does not divide 7*11 = 77): exercises the flat
    #    lane-dense 1-D fallback, including its partial final block.
    x5 = jax.random.normal(kx3, (7, 11, W), dtype=jnp.float32)
    y5 = jax.block_until_ready(multiplier(x5, weight2, bias2))
    assert jnp.allclose(y5, x5 * weight2 + bias2, atol=1e-6, rtol=1e-6)

    print("KERNEL_OK")
</pallas_src>

<mosaic_0001>
module attributes {stable_mosaic.version = 11 : i64} {
  func.func @_multiplier_kernel(%arg0: i32, %arg1: memref<8x128xf32, #tpu.memory_space<vmem>>, %arg2: memref<1x128xf32, #tpu.memory_space<vmem>>, %arg3: memref<1x128xf32, #tpu.memory_space<vmem>>, %arg4: memref<8x128xf32, #tpu.memory_space<vmem>>) attributes {dimension_semantics = [#tpu.dimension_semantics<parallel>], iteration_bounds = array<i64: 2>, scalar_prefetch = 0 : i64, scratch_operands = 0 : i64, tpu.core_type = #tpu.core_type<tc>, window_params = [{transform_indices = @transform_0, window_bounds = array<i64: 8, 128>}, {pipeline_mode = #tpu.pipeline_mode<synchronous>, transform_indices = @transform_1, window_bounds = array<i64: 1, 128>}, {pipeline_mode = #tpu.pipeline_mode<synchronous>, transform_indices = @transform_2, window_bounds = array<i64: 1, 128>}, {transform_indices = @transform_3, window_bounds = array<i64: 8, 128>}]} {
    %c0 = arith.constant 0 : index
    %c0_0 = arith.constant 0 : index
    %0 = vector.load %arg1[%c0, %c0_0] : memref<8x128xf32, #tpu.memory_space<vmem>>, vector<8x128xf32>
    %c0_1 = arith.constant 0 : index
    %c0_2 = arith.constant 0 : index
    %1 = vector.load %arg2[%c0_1, %c0_2] : memref<1x128xf32, #tpu.memory_space<vmem>>, vector<1x128xf32>
    %2 = vector.broadcast %1 : vector<1x128xf32> to vector<8x128xf32>
    %3 = arith.mulf %0, %2 : vector<8x128xf32>
    %c0_3 = arith.constant 0 : index
    %c0_4 = arith.constant 0 : index
    %4 = vector.load %arg3[%c0_3, %c0_4] : memref<1x128xf32, #tpu.memory_space<vmem>>, vector<1x128xf32>
    %5 = vector.broadcast %4 : vector<1x128xf32> to vector<8x128xf32>
    %6 = arith.addf %3, %5 : vector<8x128xf32>
    %c0_5 = arith.constant 0 : index
    %c0_6 = arith.constant 0 : index
    %7 = vector.load %arg4[%c0_5, %c0_6] : memref<8x128xf32, #tpu.memory_space<vmem>>, vector<8x128xf32>
    tpu.vector_store %arg4[%c0_5, %c0_6], %6 {strides = array<i32>} : memref<8x128xf32, #tpu.memory_space<vmem>>, vector<8x128xf32>,
    return
  }
  func.func @transform_0(%arg0: i32) -> (i32, i32) {
    %c0_i32 = arith.constant 0 : i32
    %c0_i32_0 = arith.constant 0 : i32
    return %arg0, %c0_i32 : i32, i32
  }
  func.func @transform_1(%arg0: i32) -> (i32, i32) {
    %c0_i32 = arith.constant 0 : i32
    %c0_i32_0 = arith.constant 0 : i32
    %c0_i32_1 = arith.constant 0 : i32
    return %c0_i32, %c0_i32_0 : i32, i32
  }
  func.func @transform_2(%arg0: i32) -> (i32, i32) {
    %c0_i32 = arith.constant 0 : i32
    %c0_i32_0 = arith.constant 0 : i32
    %c0_i32_1 = arith.constant 0 : i32
    return %c0_i32, %c0_i32_0 : i32, i32
  }
  func.func @transform_3(%arg0: i32) -> (i32, i32) {
    %c0_i32 = arith.constant 0 : i32
    %c0_i32_0 = arith.constant 0 : i32
    return %arg0, %c0_i32 : i32, i32
  }
}

</mosaic_0001>

<llo_original>
// kernel: tpu_custom_call.1
$region0: #{tpu_custom_call.1}
  #allocation0 [shape = 'u32[]', space=smem, size = 0x4, offset = 0x4, fixed_abs, tag = 'smem constant byte address 0x4 - core index']
  #allocation1 [shape = 'u32[144,128]{1,0:T(1,128)}', space=vmem, size = 0x12000, scoped, tag = 'internal scratch']
  %s0 = inlined_call_operand.hbm [shape: f32[16,128], index: 0, kind: input, shape index: {}]
  %s1 = inlined_call_operand.vmem [shape: f32[1,128], index: 1, kind: input, shape index: {}]
  %s2 = inlined_call_operand.vmem [shape: f32[1,128], index: 2, kind: input, shape index: {}]
  %s3 = inlined_call_operand.hbm [shape: f32[16,128], index: 3, kind: output, shape index: {}]
  %s4 = sld [smem:[#allocation0]]
  $region49: #{tpu_custom_call.1} parent=0
    _
  %s6 = ssub.s32 1, %s4
  %s7 = scalar_select 0, %s6, %s4
  $region1: #{tpu_custom_call.1} parent=0
    #allocation2 [shape = 'u8[8192]{0}', space=vmem, size = 0x2000, scoped, tag = 'input window, operand 0']
    #allocation3 [shape = 's32[2]{0}', space=sflag, size = 0x8, scoped, tag = 'scoped memory for tpu_custom_call.1']
    #allocation4 [shape = 's32[2]{0}', space=sflag, size = 0x8, scoped, tag = 'scoped memory for tpu_custom_call.1']
    #allocation5 [shape = 'u8[8192]{0}', space=vmem, size = 0x2000, scoped, tag = 'output window, operand 0']
    %8 = vsyncpa [#allocation3], 0
    %s9 = scalar_lea.sflag [#allocation3], 1
    %10 = vsyncpa %s9, 0
    %11 = vsyncpa [#allocation4], 0
    %s12 = scalar_lea.sflag [#allocation4], 1
    %13 = vsyncpa %s12, 0
    loop: start=0, step=1, limit=4
    $region2: #{tpu_custom_call.1} parent=1 // loop_pre_header
      _
    $region3: #{tpu_custom_call.1} parent=1 // loop_header
      %s15 = sphi 0, %s19
      %p16 = scmp.ge.s32.totalorder %s15, 4
      %s25 = sphi 0, %s27
      %s28 = sphi 0, %s25
      %s29 = sphi 0, %s28
      %s45 = sphi 0, %s29
      %s49 = sphi 0, %s49
      %s51 = sphi 0, %s49
      %s52 = sphi 0, %s51
      %s66 = sphi 0, %s52
      %s70 = sphi 0, %s70
      %s72 = sphi 0, %s70
      %s73 = sphi 0, %s72
      %s87 = sphi 0, %s73
      %s93 = sphi 0, %s95
      %s96 = sphi 0, %s93
      %s97 = sphi 0, %s96
      %s113 = sphi 0, %s97
    $region4: #{tpu_custom_call.1} parent=1 // loop_header_branch
      %18 = sbr.rel (%p16) target = $region8
    $region5: #{tpu_custom_call.1} parent=1 // loop_body
      %s20 = ssub.s32 %s15, 1
      %s21 = ssub.s32 %s15, 2
      %s22 = sadd.s32 %s15, 1
      %s23 = ssub.s32 %s15, %s22
      %p24 = scmp.eq.s32.totalorder %s23, 0
      %s26 = sadd.s32 %s25, 1
      %s27 = scalar_select %p24, %s25, %s26
      %p30 = pneg %p24
      %p31 = scmp.eq.s32.totalorder %s15, 1
      %p32 = por %p30, %p31
      %p33 = scmp.ne.s32.totalorder %s25, %s28
      %p34 = scmp.eq.s32.totalorder %s15, 0
      %p35 = por %p33, %p34
      %p36 = scmp.ne.s32.totalorder %s25, %s28
      %p37 = scmp.eq.s32.totalorder %s20, 1
      %p38 = por %p36, %p37
      %p39 = scmp.ne.s32.totalorder %s28, %s29
      %p40 = scmp.eq.s32.totalorder %s20, 0
      %p41 = por %p39, %p40
      %p42 = scmp.ne.s32.totalorder %s28, %s29
      %p43 = scmp.eq.s32.totalorder %s21, 1
      %p44 = por %p42, %p43
      %p46 = scmp.ne.s32.totalorder %s29, %s45
      %p47 = scmp.eq.s32.totalorder %s21, 0
      %p48 = por %p46, %p47
      %s50 = sadd.s32 %s49, 1
      %p53 = scmp.eq.s32.totalorder %s15, 1
      %p54 = scmp.ne.s32.totalorder %s49, %s51
      %p55 = scmp.eq.s32.totalorder %s15, 0
      %p56 = por %p54, %p55
      %p57 = scmp.ne.s32.totalorder %s49, %s51
      %p58 = scmp.eq.s32.totalorder %s20, 1
      %p59 = por %p57, %p58
      %p60 = scmp.ne.s32.totalorder %s51, %s52
      %p61 = scmp.eq.s32.totalorder %s20, 0
      %p62 = por %p60, %p61
      %p63 = scmp.ne.s32.totalorder %s51, %s52
      %p64 = scmp.eq.s32.totalorder %s21, 1
      %p65 = por %p63, %p64
      %p67 = scmp.ne.s32.totalorder %s52, %s66
      %p68 = scmp.eq.s32.totalorder %s21, 0
      %p69 = por %p67, %p68
      %s71 = sadd.s32 %s70, 1
      %p74 = scmp.eq.s32.totalorder %s15, 1
      %p75 = scmp.ne.s32.totalorder %s70, %s72
      %p76 = scmp.eq.s32.totalorder %s15, 0
      %p77 = por %p75, %p76
      %p78 = scmp.ne.s32.totalorder %s70, %s72
      %p79 = scmp.eq.s32.totalorder %s20, 1
      %p80 = por %p78, %p79
      %p81 = scmp.ne.s32.totalorder %s72, %s73
      %p82 = scmp.eq.s32.totalorder %s20, 0
      %p83 = por %p81, %p82
      %p84 = scmp.ne.s32.totalorder %s72, %s73
      %p85 = scmp.eq.s32.totalorder %s21, 1
      %p86 = por %p84, %p85
      %p88 = scmp.ne.s32.totalorder %s73, %s87
      %p89 = scmp.eq.s32.totalorder %s21, 0
      %p90 = por %p88, %p89
      %s91 = ssub.s32 %s15, %s22
      %p92 = scmp.eq.s32.totalorder %s91, 0
      %s94 = sadd.s32 %s93, 1
      %s95 = scalar_select %p92, %s93, %s94
      %p98 = pneg %p92
      %p99 = scmp.eq.s32.totalorder %s15, 1
      %p100 = por %p98, %p99
      %p101 = scmp.ne.s32.totalorder %s93, %s96
      %p102 = scmp.eq.s32.totalorder %s15, 0
      %p103 = por %p101, %p102
      %p104 = scmp.ne.s32.totalorder %s93, %s96
      %p105 = scmp.eq.s32.totalorder %s20, 1
      %p106 = por %p104, %p105
      %p107 = scmp.ne.s32.totalorder %s96, %s97
      %p108 = scmp.eq.s32.totalorder %s20, 0
      %p109 = por %p107, %p108
      %p110 = scmp.ne.s32.totalorder %s96, %s97
      %p111 = scmp.eq.s32.totalorder %s21, 1
      %p112 = por %p110, %p111
      %p114 = scmp.ne.s32.totalorder %s97, %s113
      %p115 = scmp.eq.s32.totalorder %s21, 0
      %p116 = por %p114, %p115
      %p117 = scmp.le.s32.totalorder 1, %s15
      %p118 = scmp.lt.s32.totalorder %s15, 3
      %p119 = pnand %p117, %p118
      %p120 = pneg %p119
      // Predicated region
      $region9: #{tpu_custom_call.1} parent=5 // pred_check
        _
      $region10: #{tpu_custom_call.1} parent=5 // pred_check_branch
        %122 = sbr.rel (%p119) target = $region12
      $region11: #{tpu_custom_call.1} parent=5 // pred_region
        %s123 = ssub.s32 %s15, 1
        // Predicated region
        $region13: #{tpu_custom_call.1} parent=11 // pred_check
          %p124 = pneg %p62
        $region14: #{tpu_custom_call.1} parent=11 // pred_check_branch
          %126 = sbr.rel (%p124) target = $region16
        $region15: #{tpu_custom_call.1} parent=11 // pred_region
          _
        $region16: #{tpu_custom_call.1} parent=11 // pred_fallthru
          _
        // Predicated region
        $region17: #{tpu_custom_call.1} parent=11 // pred_check
          %p127 = pneg %p83
        $region18: #{tpu_custom_call.1} parent=11 // pred_check_branch
          %129 = sbr.rel (%p127) target = $region20
        $region19: #{tpu_custom_call.1} parent=11 // pred_region
          _
        $region20: #{tpu_custom_call.1} parent=11 // pred_fallthru
          _
      $region12: #{tpu_custom_call.1} parent=5 // pred_fallthru
        _
      %p130 = scmp.lt.s32.totalorder %s15, 2
      // Predicated region
      $region21: #{tpu_custom_call.1} parent=5 // pred_check
        %p131 = pneg %p130
      $region22: #{tpu_custom_call.1} parent=5 // pred_check_branch
        %133 = sbr.rel (%p131) target = $region24
      $region23: #{tpu_custom_call.1} parent=5 // pred_region
        // Predicated region
        $region25: #{tpu_custom_call.1} parent=23 // pred_check
          %p134 = pneg %p35
        $region26: #{tpu_custom_call.1} parent=23 // pred_check_branch
          %136 = sbr.rel (%p134) target = $region28
        $region27: #{tpu_custom_call.1} parent=23 // pred_region
          %s137 = sand.u32 %s25, 1
          %s138 = scalar_lea.sflag [#allocation3], %s137
          %s139 = sand.u32 %s25, 1
          %s140 = smul.addr %s139, 8
          %s141 = scalar_lea.vmem [#allocation2], %s140
          %s143 = ssub.s32 128, 128
          %144 = vsyncadd %s138, %s143
          %s145 = smul.addr %s15, 128
          %s146 = scalar_lea.hbm %s0, %s145
          %s148 = sshll.u32 %s141, 4
          %s149 = int_to_ptr.vmem [resolvable:$true] %s148
          %151 = dma.hbm_to_vmem [thread:$0]  %s146, 128, %s149, %s138
        $region28: #{tpu_custom_call.1} parent=23 // pred_fallthru
          _
      $region24: #{tpu_custom_call.1} parent=5 // pred_fallthru
        _
      %p152 = scmp.le.s32.totalorder 1, %s15
      %p153 = scmp.lt.s32.totalorder %s15, 3
      %p154 = pnand %p152, %p153
      %p155 = pneg %p154
      // Predicated region
      $region29: #{tpu_custom_call.1} parent=5 // pred_check
        _
      $region30: #{tpu_custom_call.1} parent=5 // pred_check_branch
        %157 = sbr.rel (%p154) target = $region32
      $region31: #{tpu_custom_call.1} parent=5 // pred_region
        %s158 = ssub.s32 %s15, 1
        %s159 = sand.u32 %s28, 1
        %s160 = scalar_lea.sflag [#allocation3], %s159
        %s161 = sand.u32 %s28, 1
        %s162 = smul.addr %s161, 8
        %s163 = scalar_lea.vmem [#allocation2], %s162
        // Predicated region
        $region33: #{tpu_custom_call.1} parent=31 // pred_check
          %p164 = pneg %p41
        $region34: #{tpu_custom_call.1} parent=31 // pred_check_branch
          %166 = sbr.rel (%p164) target = $region36
        $region35: #{tpu_custom_call.1} parent=31 // pred_region
          %167 = dma.done %s160, 128
        $region36: #{tpu_custom_call.1} parent=31 // pred_fallthru
          _
        %s168 = sand.u32 %s28, 1
        %s169 = scalar_lea.sflag [#allocation3], %s168
        %s170 = sand.u32 %s28, 1
        %s171 = smul.addr %s170, 8
        %s172 = scalar_lea.vmem [#allocation2], %s171
        %p173 = pneg %p41
        %p174 = pneg %p38
        %p175 = pneg %p62
        %p176 = pneg %p59
        %p177 = pneg %p83
        %p178 = pneg %p80
        %p179 = pneg %p109
        %p180 = pneg %p106
        %s181 = sand.u32 %s96, 1
        %s182 = scalar_lea.sflag [#allocation4], %s181
        %s183 = sand.u32 %s96, 1
        %s184 = smul.addr %s183, 8
        %s185 = scalar_lea.vmem [#allocation5], %s184
        %v186 = vld [vmem:[%s163] sm:$0xff]
        %v187 = vld [vmem:[%s1] sm:$0x1]
        %v189 = vlaneseq
        %v190 = vshrl.u32 %v189, 7
        %v191 = vsub.s32 0, %v190
        %v192 = vrot.slane %v187, %v191
        %v194 = vmul.f32 %v186, %v192
        %v195 = vld [vmem:[%s2] sm:$0x1]
        %v197 = vlaneseq
        %v198 = vshrl.u32 %v197, 7
        %v199 = vsub.s32 0, %v198
        %v200 = vrot.slane %v195, %v199
        %v202 = vadd.f32 %v194, %v200
        %203 = vst [vmem:[%s185] sm:$0xff] %v202
        %s204 = sand.u32 %s96, 1
        %s205 = scalar_lea.sflag [#allocation4], %s204
        %s206 = sand.u32 %s96, 1
        %s207 = smul.addr %s206, 8
        %s208 = scalar_lea.vmem [#allocation5], %s207
        // Predicated region
        $region37: #{tpu_custom_call.1} parent=31 // pred_check
          %p209 = pneg %p106
        $region38: #{tpu_custom_call.1} parent=31 // pred_check_branch
          %211 = sbr.rel (%p209) target = $region40
        $region39: #{tpu_custom_call.1} parent=31 // pred_region
          %s213 = ssub.s32 128, 128
          %214 = vsyncadd %s205, %s213
          %s215 = smul.addr %s20, 128
          %s216 = scalar_lea.hbm %s3, %s215
          %s218 = sshll.u32 %s208, 4
          %s219 = int_to_ptr.vmem [resolvable:$true] %s218
          %221 = dma.vmem_to_hbm [thread:$0]  %s219, 128, %s216, %s205
        $region40: #{tpu_custom_call.1} parent=31 // pred_fallthru
          _
      $region32: #{tpu_custom_call.1} parent=5 // pred_fallthru
        _
      %p222 = scmp.le.s32.totalorder 2, %s15
      // Predicated region
      $region41: #{tpu_custom_call.1} parent=5 // pred_check
        %p223 = pneg %p222
      $region42: #{tpu_custom_call.1} parent=5 // pred_check_branch
        %225 = sbr.rel (%p223) target = $region44
      $region43: #{tpu_custom_call.1} parent=5 // pred_region
        %s226 = ssub.s32 %s15, 2
        // Predicated region
        $region45: #{tpu_custom_call.1} parent=43 // pred_check
          %p227 = pneg %p112
        $region46: #{tpu_custom_call.1} parent=43 // pred_check_branch
          %229 = sbr.rel (%p227) target = $region48
        $region47: #{tpu_custom_call.1} parent=43 // pred_region
          %s230 = sand.u32 %s97, 1
          %s231 = scalar_lea.sflag [#allocation4], %s230
          %s232 = sand.u32 %s97, 1
          %s233 = smul.addr %s232, 8
          %s234 = scalar_lea.vmem [#allocation5], %s233
          %235 = dma.done %s231, 128
        $region48: #{tpu_custom_call.1} parent=43 // pred_fallthru
          _
      $region44: #{tpu_custom_call.1} parent=5 // pred_fallthru
        _
    $region6: #{tpu_custom_call.1} parent=1 // loop_footer
      %s19 = sadd.s32 1, %s15
    $region7: #{tpu_custom_call.1} parent=1 // loop_footer_branch
      %14 = sbr.rel target = $region3
    $region8: #{tpu_custom_call.1} parent=1 // loop_exit
      _
    %236 = vsyncpa [#allocation3], 1
    %s237 = scalar_lea.sflag [#allocation3], 1
    %238 = vsyncpa %s237, 1
    %239 = vsyncpa [#allocation4], 1
    %s240 = scalar_lea.sflag [#allocation4], 1
    %241 = vsyncpa %s240, 1

</llo_original>
